<compile_context>
chip_gen: v6e
topology: v6e:2x2x1
jax: 0.10.0
libtpu: 0.0.40
codegen_flags: <defaults>
</compile_context>

<pallas_src>
import functools
import math

import numpy as np
import jax
import jax.numpy as jnp
from jax.experimental import pallas as pl
from jax.experimental.pallas import tpu as pltpu


def _round_up(x: int, n: int) -> int:
    return ((x + n - 1) // n) * n


def _pe_kernel(freq_ref, phase_ref, v_ref, o_ref):
    """vp = v @ freq (MXU) + phase;  out = cos(vp)  (single fused transcendental).

    freq_ref : (kD_pad, kF)  block-diagonal frequency table (constant, fetched once)
    phase_ref: (1, kF)       per-lane phase: 0 for cos lanes, -pi/2 for sin lanes
    v_ref    : (tNk, kD_pad) k packed coordinate rows per compute row
    o_ref    : (tNk, kF)     lane-dense (multiple-of-128) encoded tile
    """
    vp = jnp.dot(v_ref[...], freq_ref[...],
                 preferred_element_type=jnp.float32,
                 precision=jax.lax.Precision.HIGHEST)
    vp = vp + phase_ref[...]
    o_ref[...] = jnp.cos(vp).astype(o_ref.dtype)


@functools.lru_cache(maxsize=None)
def _build_tables(sigma: float, m: int, D: int, k: int, kD_pad: int):
    """Host-side constant tables, cached across calls.

    Returns:
      freq : (kD_pad, k*F) block-diagonal masked-frequency matrix
      phase: (1, k*F)      per-lane phase (0 for cos half, -pi/2 for sin half)
    with F = 2*m*D and output lane layout per input dim d:
      [cos(c_0 v_d) .. cos(c_{m-1} v_d), sin(c_0 v_d) .. sin(c_{m-1} v_d)]
    """
    F = 2 * m * D
    j = np.arange(m, dtype=np.float64)
    coeffs = 2.0 * np.pi * (float(sigma) ** (j / m))             # (m,)
    base_f = np.zeros((D, F), dtype=np.float64)
    base_p = np.zeros((F,), dtype=np.float64)
    for d in range(D):
        lo = 2 * m * d
        base_f[d, lo:lo + m] = coeffs                            # cos lanes
        base_f[d, lo + m:lo + 2 * m] = coeffs                    # sin lanes
        base_p[lo + m:lo + 2 * m] = -0.5 * np.pi                 # sin(x) = cos(x - pi/2)
    freq = np.zeros((kD_pad, k * F), dtype=np.float64)
    for r in range(k):
        freq[r * D:(r + 1) * D, r * F:(r + 1) * F] = base_f      # block diagonal
    phase = np.tile(base_p, k)[None, :]
    return freq.astype(np.float32), phase.astype(np.float32)


def positional_encoding(v, sigma: float, m: int, *,
                        row_tile: int = 8192,
                        out_dtype=jnp.float32,
                        vmem_budget_bytes: int = 12 * 1024 * 1024):
    """Multi-scale positional encoding. v: (batch, *, D) -> (batch, *, 2*m*D)."""
    orig_shape = v.shape
    D = int(orig_shape[-1])
    N = int(np.prod(orig_shape[:-1])) if len(orig_shape) > 1 else 1
    F = 2 * m * D
    out_dtype = jnp.dtype(out_dtype)

    # Pack k rows per compute row so the output lane width k*F is a multiple of 128.
    k = 128 // math.gcd(F, 128)
    if k * F > 8192:                       # pathological F: fall back to unpacked
        k = 1
    kD, kF = k * D, k * F
    kD_pad = _round_up(kD, 8)              # MXU-friendly contraction dim

    v2 = jnp.asarray(v, jnp.float32).reshape(N, D)
    N_pad = _round_up(N, k)                # tiny pad (< k rows of D floats)
    if N_pad != N:
        v2 = jnp.pad(v2, ((0, N_pad - N), (0, 0)))
    N_k = N_pad // k
    v_packed = v2.reshape(N_k, kD)
    if kD_pad != kD:
        v_packed = jnp.pad(v_packed, ((0, 0), (0, kD_pad - kD)))

    freq_np, phase_np = _build_tables(float(sigma), int(m), D, k, kD_pad)
    freq = jnp.asarray(freq_np)            # constant-folds under jit
    phase = jnp.asarray(phase_np)

    # ---- row-tile selection -------------------------------------------------
    tNk = _round_up(max(row_tile // k, 8), 8)          # target packed rows / step
    tNk = min(tNk, _round_up(N_k, 8))                  # never bigger than the problem
    # Keep >=2 grid steps when there is enough work (v7x: feed both TensorCores).
    tNk = min(tNk, _round_up(max(-(-N_k // 2), 8), 8))

    def _step_bytes(t):
        v_blk = t * _round_up(kD_pad, 128) * 4          # lane-padded v block
        o_blk = t * kF * out_dtype.itemsize             # output block
        acc = t * kF * 4                                # f32 matmul/cos intermediate
        return 2 * (v_blk + o_blk) + acc                # double-buffered in/out

    while tNk > 8 and _step_bytes(tNk) > vmem_budget_bytes:
        tNk = _round_up(tNk // 2, 8)

    grid_n = pl.cdiv(N_k, tNk)             # ragged last block: OOB writes dropped

    out = pl.pallas_call(
        _pe_kernel,
        out_shape=jax.ShapeDtypeStruct((N_k, kF), out_dtype),
        grid_spec=pltpu.PrefetchScalarGridSpec(
            num_scalar_prefetch=0,
            grid=(grid_n,),
            in_specs=[
                # Constant tables: block index never changes -> fetched once.
                pl.BlockSpec((kD_pad, kF), lambda i: (0, 0)),
                pl.BlockSpec((1, kF), lambda i: (0, 0)),
                # Packed coordinate rows.
                pl.BlockSpec((tNk, kD_pad), lambda i: (i, 0)),
            ],
            # Lane-dense (multiple-of-128) 2D output block -> unmasked wide stores.
            out_specs=pl.BlockSpec((tNk, kF), lambda i: (i, 0)),
        ),
        compiler_params=pltpu.CompilerParams(
            dimension_semantics=("parallel",),   # shards grid across TCs on v7x
        ),
    )(freq, phase, v_packed)

    out = out.reshape(N_pad, F)             # contiguous un-packing view
    if N_pad != N:
        out = out[:N]                       # trims at most k-1 rows
    return out.reshape(*orig_shape[:-1], F)


def _reference_np(v, sigma, m):
    """float64 numpy reference matching the PyTorch module."""
    v = np.asarray(v, dtype=np.float64)
    j = np.arange(m, dtype=np.float64)
    coeffs = 2.0 * np.pi * (sigma ** (j / m))
    vp = coeffs * v[..., None]                                   # (..., D, m)
    cat = np.concatenate([np.cos(vp), np.sin(vp)], axis=-1)      # (..., D, 2m)
    return cat.reshape(*v.shape[:-1], -1)                        # (..., 2mD)


if __name__ == "__main__":
    sigma = 10.0
    m = 16
    B, P, D = 2, 8, 3                      # (batch, points, input_size)

    key = jax.random.PRNGKey(0)
    v = jax.random.uniform(key, (B, P, D), dtype=jnp.float32, minval=-1.0, maxval=1.0)

    pe = jax.jit(lambda x: positional_encoding(x, sigma, m))
    out = jax.block_until_ready(pe(v))
    assert out.shape == (B, P, 2 * m * D), out.shape
    np.testing.assert_allclose(np.asarray(out), _reference_np(v, sigma, m),
                               rtol=3e-5, atol=3e-5)

    # Non-divisible row count + multi-step ragged grid (exercises the packing pad
    # and the partially out-of-bounds last block).
    v2 = jax.random.uniform(jax.random.PRNGKey(1), (3, 37, D), dtype=jnp.float32,
                            minval=-1.0, maxval=1.0)
    pe_small = jax.jit(lambda x: positional_encoding(x, sigma, m, row_tile=64))
    out2 = jax.block_until_ready(pe_small(v2))
    assert out2.shape == (3, 37, 2 * m * D), out2.shape
    np.testing.assert_allclose(np.asarray(out2), _reference_np(v2, sigma, m),
                               rtol=3e-5, atol=3e-5)

    print("KERNEL_OK")
</pallas_src>

<mosaic_0001>
module attributes {stable_mosaic.version = 11 : i64} {
  func.func @_pe_kernel(%arg0: i32, %arg1: memref<16x384xf32, #tpu.memory_space<vmem>>, %arg2: memref<1x384xf32, #tpu.memory_space<vmem>>, %arg3: memref<8x16xf32, #tpu.memory_space<vmem>>, %arg4: memref<8x384xf32, #tpu.memory_space<vmem>>) attributes {dimension_semantics = [#tpu.dimension_semantics<parallel>], iteration_bounds = array<i64: 1>, scalar_prefetch = 0 : i64, scratch_operands = 0 : i64, tpu.core_type = #tpu.core_type<tc>, window_params = [{pipeline_mode = #tpu.pipeline_mode<synchronous>, transform_indices = @transform_0, window_bounds = array<i64: 16, 384>}, {pipeline_mode = #tpu.pipeline_mode<synchronous>, transform_indices = @transform_1, window_bounds = array<i64: 1, 384>}, {transform_indices = @transform_2, window_bounds = array<i64: 8, 16>}, {transform_indices = @transform_3, window_bounds = array<i64: 8, 384>}]} {
    %c0 = arith.constant 0 : index
    %c0_0 = arith.constant 0 : index
    %0 = vector.load %arg3[%c0, %c0_0] : memref<8x16xf32, #tpu.memory_space<vmem>>, vector<8x16xf32>
    %c0_1 = arith.constant 0 : index
    %c0_2 = arith.constant 0 : index
    %1 = vector.load %arg1[%c0_1, %c0_2] : memref<16x384xf32, #tpu.memory_space<vmem>>, vector<16x384xf32>
    %cst = arith.constant dense<0.000000e+00> : vector<8x384xf32>
    %2 = tpu.matmul %0, %1, %cst {dimension_numbers = #tpu.dot_dimension_numbers<[1], [0], [0], [1], [0, 0, 1, 1], [], []>, precision = #tpu.contract_precision<fp32>} : vector<8x16xf32>, vector<16x384xf32>, vector<8x384xf32> -> vector<8x384xf32>
    %c0_3 = arith.constant 0 : index
    %c0_4 = arith.constant 0 : index
    %3 = vector.load %arg2[%c0_3, %c0_4] : memref<1x384xf32, #tpu.memory_space<vmem>>, vector<1x384xf32>
    %4 = vector.broadcast %3 : vector<1x384xf32> to vector<8x384xf32>
    %5 = arith.addf %2, %4 : vector<8x384xf32>
    %6 = math.cos %5 : vector<8x384xf32>
    %c0_5 = arith.constant 0 : index
    %c0_6 = arith.constant 0 : index
    %7 = vector.load %arg4[%c0_5, %c0_6] : memref<8x384xf32, #tpu.memory_space<vmem>>, vector<8x384xf32>
    tpu.vector_store %arg4[%c0_5, %c0_6], %6 {strides = array<i32>} : memref<8x384xf32, #tpu.memory_space<vmem>>, vector<8x384xf32>,
    return
  }
  func.func @transform_0(%arg0: i32) -> (i32, i32) {
    %c0_i32 = arith.constant 0 : i32
    %c0_i32_0 = arith.constant 0 : i32
    %c0_i32_1 = arith.constant 0 : i32
    return %c0_i32, %c0_i32_0 : i32, i32
  }
  func.func @transform_1(%arg0: i32) -> (i32, i32) {
    %c0_i32 = arith.constant 0 : i32
    %c0_i32_0 = arith.constant 0 : i32
    %c0_i32_1 = arith.constant 0 : i32
    return %c0_i32, %c0_i32_0 : i32, i32
  }
  func.func @transform_2(%arg0: i32) -> (i32, i32) {
    %c0_i32 = arith.constant 0 : i32
    %c0_i32_0 = arith.constant 0 : i32
    return %arg0, %c0_i32 : i32, i32
  }
  func.func @transform_3(%arg0: i32) -> (i32, i32) {
    %c0_i32 = arith.constant 0 : i32
    %c0_i32_0 = arith.constant 0 : i32
    return %arg0, %c0_i32 : i32, i32
  }
}

</mosaic_0001>

<llo_original>
// kernel: _lambda_.1
$region0: #{_lambda_.1}
  #allocation0 [shape = 'u32[]', space=smem, size = 0x4, offset = 0x4, fixed_abs, tag = 'smem constant byte address 0x4 - core index']
  #allocation1 [shape = 'u32[144,128]{1,0:T(1,128)}', space=vmem, size = 0x12000, scoped, tag = 'internal scratch']
  %s0 = inlined_call_operand.vmem [shape: f32[16,384], index: 0, kind: input, shape index: {}]
  %s1 = inlined_call_operand.vmem [shape: f32[1,384], index: 1, kind: input, shape index: {}]
  %s2 = inlined_call_operand.vmem [shape: f32[4,16], index: 2, kind: input, shape index: {}]
  %s3 = inlined_call_operand.vmem [shape: f32[4,384], index: 3, kind: output, shape index: {}]
  %s4 = sld [smem:[#allocation0]]
  $region44: #{_lambda_.1} parent=0
    _
  %s6 = ssub.s32 1, %s4
  %s7 = scalar_select 0, %s6, %s4
  $region1: #{_lambda_.1} parent=0
    #allocation2 [shape = 'u8[12288]{0}', space=vmem, size = 0x3000, scoped, tag = 'output window, operand 0, single buffered']
    // Predicated region
    $region2: #{_lambda_.1} parent=1 // pred_check
      _
    $region3: #{_lambda_.1} parent=1 // pred_check_branch
      %9 = sbr.rel (0) target = $region5
    $region4: #{_lambda_.1} parent=1 // pred_region
      _
    $region5: #{_lambda_.1} parent=1 // pred_fallthru
      _
    // Predicated region
    $region6: #{_lambda_.1} parent=1 // pred_check
      _
    $region7: #{_lambda_.1} parent=1 // pred_check_branch
      %11 = sbr.rel (0) target = $region9
    $region8: #{_lambda_.1} parent=1 // pred_region
      _
    $region9: #{_lambda_.1} parent=1 // pred_fallthru
      _
    // Predicated region
    $region10: #{_lambda_.1} parent=1 // pred_check
      _
    $region11: #{_lambda_.1} parent=1 // pred_check_branch
      %13 = sbr.rel (0) target = $region13
    $region12: #{_lambda_.1} parent=1 // pred_region
      _
    $region13: #{_lambda_.1} parent=1 // pred_fallthru
      _
    %v14 = vld [vmem:[%s2] sm:$0xff]
    %v15 = vld [vmem:[%s0] sm:$0xff]
    %v16 = vld [vmem:[%s0 + $0x8] sm:$0xff]
    %v17 = vld [vmem:[%s0 + $0x10] sm:$0xff]
    %v18 = vld [vmem:[%s0 + $0x18] sm:$0xff]
    %v19 = vld [vmem:[%s0 + $0x20] sm:$0xff]
    %v20 = vld [vmem:[%s0 + $0x28] sm:$0xff]
    %v21 = vld [vmem:[%s1] sm:$0x7]
    %v23 = vlaneseq
    %v24 = vshrl.u32 %v23, 7
    %v25 = vsub.s32 0, %v24
    %v26 = vrot.slane %v21, %v25
    %v27 = vlaneseq
    %v28 = vshrl.u32 %v27, 7
    %v29 = vsub.s32 1, %v28
    %v30 = vrot.slane %v21, %v29
    %v31 = vlaneseq
    %v32 = vshrl.u32 %v31, 7
    %v33 = vsub.s32 2, %v32
    %v34 = vrot.slane %v21, %v33
    %vm38 = vcmask 130048
    %v40 = vsel %vm38, %v14, 0
    %42 = vmatprep.subr.mxu0 0.0
    %43 = vmatpush1.msra.mxu0 0.0
    %44 = vmatprep.subr.mxu0 0.0
    %45 = vmatpush1.msra.mxu0 0.0
    %46 = vmatprep.subr.mxu0 0.0
    %47 = vmatpush1.msra.mxu0 0.0
    %48 = vmatprep.subr.mxu0 0.0
    %49 = vmatpush1.msra.mxu0 0.0
    %50 = vmatprep.subr.mxu0 0.0
    %51 = vmatpush1.msra.mxu0 0.0
    %52 = vmatprep.subr.mxu0 0.0
    %53 = vmatpush1.msra.mxu0 0.0
    %54 = vmatprep.subr.mxu0 0.0
    %55 = vmatpush1.msra.mxu0 0.0
    %56 = vmatprep.subr.mxu0 0.0
    %57 = vmatpush1.msra.mxu0 0.0
    %58 = vmatprep.subr.mxu0 0.0
    %59 = vmatpush1.msra.mxu0 0.0
    %60 = vmatprep.subr.mxu0 0.0
    %61 = vmatpush1.msra.mxu0 0.0
    %62 = vmatprep.subr.mxu0 0.0
    %63 = vmatpush1.msra.mxu0 0.0
    %64 = vmatprep.subr.mxu0 0.0
    %65 = vmatpush1.msra.mxu0 0.0
    %66 = vmatprep.subr.mxu0 0.0
    %67 = vmatpush1.msra.mxu0 0.0
    %68 = vmatprep.subr.mxu0 0.0
    %69 = vmatpush1.msra.mxu0 0.0
    %v70 = vand.u32 %v19, 4294901760
    %71 = vmatprep.subr.mxu0 %v70
    %v72 = vand.u32 %v18, 4294901760
    %73 = vmatpush1.msra.mxu0 %v72
    %v74 = vand.u32 %v16, 4294901760
    %75 = vmatprep.subr.mxu0 %v74
    %v76 = vand.u32 %v15, 4294901760
    %77 = vmatpush1.msra.mxu0 %v76
    %78 = vmatprep.subr.mxu0 0.0
    %79 = vmatpush2.msra.mxu0 0.0
    %80 = vmatprep.subr.mxu0 0.0
    %81 = vmatpush2.msra.mxu0 0.0
    %82 = vmatprep.subr.mxu0 0.0
    %83 = vmatpush2.msra.mxu0 0.0
    %84 = vmatprep.subr.mxu0 0.0
    %85 = vmatpush2.msra.mxu0 0.0
    %86 = vmatprep.subr.mxu0 0.0
    %87 = vmatpush2.msra.mxu0 0.0
    %88 = vmatprep.subr.mxu0 0.0
    %89 = vmatpush2.msra.mxu0 0.0
    %90 = vmatprep.subr.mxu0 0.0
    %91 = vmatpush2.msra.mxu0 0.0
    %92 = vmatprep.subr.mxu0 0.0
    %93 = vmatpush2.msra.mxu0 0.0
    %94 = vmatprep.subr.mxu0 0.0
    %95 = vmatpush2.msra.mxu0 0.0
    %96 = vmatprep.subr.mxu0 0.0
    %97 = vmatpush2.msra.mxu0 0.0
    %98 = vmatprep.subr.mxu0 0.0
    %99 = vmatpush2.msra.mxu0 0.0
    %100 = vmatprep.subr.mxu0 0.0
    %101 = vmatpush2.msra.mxu0 0.0
    %102 = vmatprep.subr.mxu0 0.0
    %103 = vmatpush2.msra.mxu0 0.0
    %104 = vmatprep.subr.mxu0 0.0
    %105 = vmatpush2.msra.mxu0 0.0
    %106 = vmatprep.subr.mxu0 0.0
    %107 = vmatpush2.msra.mxu0 0.0
    %108 = vmatprep.subr.mxu0 0.0
    %109 = vmatpush2.msra.mxu0 0.0
    %110 = vmatprep.mubr.f32.mxu0 0.0
    %v111 = vand.u32 %v40, 4294901760
    %v112 = vsub.f32 %v40, %v111
    %v113 = vand.u32 %v112, 4294901760
    %v114 = vsub.f32 %v112, %v113
    %v115 = vand.u32 %v114, 4294901760
    %116 = vmatmul.mubr.f32.gmra.mxu0 %v115
    %v117 = vpop.f32.mrf.mxu0
    %v118 = vadd.f32 %v26, %v117
    %v119 = vpop.f32.mrf.mxu0
    %v120 = vadd.f32 %v30, %v119
    %121 = vdwg.mxu0
    %122 = vmatprep.subr.mxu0 0.0
    %123 = vmatpush1.msra.mxu0 0.0
    %124 = vmatprep.subr.mxu0 0.0
    %125 = vmatpush1.msra.mxu0 0.0
    %126 = vmatprep.subr.mxu0 0.0
    %127 = vmatpush1.msra.mxu0 0.0
    %128 = vmatprep.subr.mxu0 0.0
    %129 = vmatpush1.msra.mxu0 0.0
    %130 = vmatprep.subr.mxu0 0.0
    %131 = vmatpush1.msra.mxu0 0.0
    %132 = vmatprep.subr.mxu0 0.0
    %133 = vmatpush1.msra.mxu0 0.0
    %134 = vmatprep.subr.mxu0 0.0
    %135 = vmatpush1.msra.mxu0 0.0
    %136 = vmatprep.subr.mxu0 0.0
    %137 = vmatpush1.msra.mxu0 0.0
    %138 = vmatprep.subr.mxu0 0.0
    %139 = vmatpush1.msra.mxu0 0.0
    %140 = vmatprep.subr.mxu0 0.0
    %141 = vmatpush1.msra.mxu0 0.0
    %142 = vmatprep.subr.mxu0 0.0
    %143 = vmatpush1.msra.mxu0 0.0
    %144 = vmatprep.subr.mxu0 0.0
    %145 = vmatpush1.msra.mxu0 0.0
    %146 = vmatprep.subr.mxu0 0.0
    %147 = vmatpush1.msra.mxu0 0.0
    %148 = vmatprep.subr.mxu0 0.0
    %149 = vmatpush1.msra.mxu0 0.0
    %v150 = vand.u32 %v19, 4294901760
    %v151 = vsub.f32 %v19, %v150
    %v152 = vand.u32 %v151, 4294901760
    %v153 = vsub.f32 %v151, %v152
    %v154 = vand.u32 %v153, 4294901760
    %155 = vmatprep.subr.mxu0 %v154
    %v156 = vand.u32 %v18, 4294901760
    %v157 = vsub.f32 %v18, %v156
    %v158 = vand.u32 %v157, 4294901760
    %v159 = vsub.f32 %v157, %v158
    %v160 = vand.u32 %v159, 4294901760
    %161 = vmatpush1.msra.mxu0 %v160
    %v162 = vand.u32 %v16, 4294901760
    %v163 = vsub.f32 %v16, %v162
    %v164 = vand.u32 %v163, 4294901760
    %v165 = vsub.f32 %v163, %v164
    %v166 = vand.u32 %v165, 4294901760
    %167 = vmatprep.subr.mxu0 %v166
    %v168 = vand.u32 %v15, 4294901760
    %v169 = vsub.f32 %v15, %v168
    %v170 = vand.u32 %v169, 4294901760
    %v171 = vsub.f32 %v169, %v170
    %v172 = vand.u32 %v171, 4294901760
    %173 = vmatpush1.msra.mxu0 %v172
    %174 = vmatprep.subr.mxu0 0.0
    %175 = vmatpush2.msra.mxu0 0.0
    %176 = vmatprep.subr.mxu0 0.0
    %177 = vmatpush2.msra.mxu0 0.0
    %178 = vmatprep.subr.mxu0 0.0
    %179 = vmatpush2.msra.mxu0 0.0
    %180 = vmatprep.subr.mxu0 0.0
    %181 = vmatpush2.msra.mxu0 0.0
    %182 = vmatprep.subr.mxu0 0.0
    %183 = vmatpush2.msra.mxu0 0.0
    %184 = vmatprep.subr.mxu0 0.0
    %185 = vmatpush2.msra.mxu0 0.0
    %186 = vmatprep.subr.mxu0 0.0
    %187 = vmatpush2.msra.mxu0 0.0
    %188 = vmatprep.subr.mxu0 0.0
    %189 = vmatpush2.msra.mxu0 0.0
    %190 = vmatprep.subr.mxu0 0.0
    %191 = vmatpush2.msra.mxu0 0.0
    %192 = vmatprep.subr.mxu0 0.0
    %193 = vmatpush2.msra.mxu0 0.0
    %194 = vmatprep.subr.mxu0 0.0
    %195 = vmatpush2.msra.mxu0 0.0
    %196 = vmatprep.subr.mxu0 0.0
    %197 = vmatpush2.msra.mxu0 0.0
    %198 = vmatprep.subr.mxu0 0.0
    %199 = vmatpush2.msra.mxu0 0.0
    %200 = vmatprep.subr.mxu0 0.0
    %201 = vmatpush2.msra.mxu0 0.0
    %202 = vmatprep.subr.mxu0 0.0
    %203 = vmatpush2.msra.mxu0 0.0
    %204 = vmatprep.subr.mxu0 0.0
    %205 = vmatpush2.msra.mxu0 0.0
    %206 = vmatprep.mubr.f32.mxu0 0.0
    %v207 = vand.u32 %v40, 4294901760
    %208 = vmatmul.mubr.f32.gmra.mxu0 %v207
    %v209 = vpop.f32.mrf.mxu0
    %v210 = vadd.f32 %v118, %v209
    %v211 = vpop.f32.mrf.mxu0
    %v212 = vadd.f32 %v120, %v211
    %213 = vdwg.mxu0
    %214 = vmatprep.subr.mxu0 0.0
    %215 = vmatpush1.msra.mxu0 0.0
    %216 = vmatprep.subr.mxu0 0.0
    %217 = vmatpush1.msra.mxu0 0.0
    %218 = vmatprep.subr.mxu0 0.0
    %219 = vmatpush1.msra.mxu0 0.0
    %220 = vmatprep.subr.mxu0 0.0
    %221 = vmatpush1.msra.mxu0 0.0
    %222 = vmatprep.subr.mxu0 0.0
    %223 = vmatpush1.msra.mxu0 0.0
    %224 = vmatprep.subr.mxu0 0.0
    %225 = vmatpush1.msra.mxu0 0.0
    %226 = vmatprep.subr.mxu0 0.0
    %227 = vmatpush1.msra.mxu0 0.0
    %228 = vmatprep.subr.mxu0 0.0
    %229 = vmatpush1.msra.mxu0 0.0
    %230 = vmatprep.subr.mxu0 0.0
    %231 = vmatpush1.msra.mxu0 0.0
    %232 = vmatprep.subr.mxu0 0.0
    %233 = vmatpush1.msra.mxu0 0.0
    %234 = vmatprep.subr.mxu0 0.0
    %235 = vmatpush1.msra.mxu0 0.0
    %236 = vmatprep.subr.mxu0 0.0
    %237 = vmatpush1.msra.mxu0 0.0
    %238 = vmatprep.subr.mxu0 0.0
    %239 = vmatpush1.msra.mxu0 0.0
    %240 = vmatprep.subr.mxu0 0.0
    %241 = vmatpush1.msra.mxu0 0.0
    %v242 = vand.u32 %v19, 4294901760
    %v243 = vsub.f32 %v19, %v242
    %244 = vmatprep.subr.mxu0 %v243
    %v245 = vand.u32 %v18, 4294901760
    %v246 = vsub.f32 %v18, %v245
    %247 = vmatpush1.msra.mxu0 %v246
    %v248 = vand.u32 %v16, 4294901760
    %v249 = vsub.f32 %v16, %v248
    %250 = vmatprep.subr.mxu0 %v249
    %v251 = vand.u32 %v15, 4294901760
    %v252 = vsub.f32 %v15, %v251
    %253 = vmatpush1.msra.mxu0 %v252
    %254 = vmatprep.subr.mxu0 0.0
    %255 = vmatpush2.msra.mxu0 0.0
    %256 = vmatprep.subr.mxu0 0.0
    %257 = vmatpush2.msra.mxu0 0.0
    %258 = vmatprep.subr.mxu0 0.0
    %259 = vmatpush2.msra.mxu0 0.0
    %260 = vmatprep.subr.mxu0 0.0
    %261 = vmatpush2.msra.mxu0 0.0
    %262 = vmatprep.subr.mxu0 0.0
    %263 = vmatpush2.msra.mxu0 0.0
    %264 = vmatprep.subr.mxu0 0.0
    %265 = vmatpush2.msra.mxu0 0.0
    %266 = vmatprep.subr.mxu0 0.0
    %267 = vmatpush2.msra.mxu0 0.0
    %268 = vmatprep.subr.mxu0 0.0
    %269 = vmatpush2.msra.mxu0 0.0
    %270 = vmatprep.subr.mxu0 0.0
    %271 = vmatpush2.msra.mxu0 0.0
    %272 = vmatprep.subr.mxu0 0.0
    %273 = vmatpush2.msra.mxu0 0.0
    %274 = vmatprep.subr.mxu0 0.0
    %275 = vmatpush2.msra.mxu0 0.0
    %276 = vmatprep.subr.mxu0 0.0
    %277 = vmatpush2.msra.mxu0 0.0
    %278 = vmatprep.subr.mxu0 0.0
    %279 = vmatpush2.msra.mxu0 0.0
    %280 = vmatprep.subr.mxu0 0.0
    %281 = vmatpush2.msra.mxu0 0.0
    %282 = vmatprep.subr.mxu0 0.0
    %283 = vmatpush2.msra.mxu0 0.0
    %284 = vmatprep.subr.mxu0 0.0
    %285 = vmatpush2.msra.mxu0 0.0
    %286 = vmatprep.mubr.f32.mxu0 0.0
    %v287 = vand.u32 %v40, 4294901760
    %v288 = vsub.f32 %v40, %v287
    %289 = vmatmul.mubr.f32.gmra.mxu0 %v288
    %v290 = vpop.f32.mrf.mxu0
    %v291 = vadd.f32 %v210, %v290
    %v292 = vpop.f32.mrf.mxu0
    %v293 = vadd.f32 %v212, %v292
    %294 = vdwg.mxu0
    %295 = vmatprep.subr.mxu0 0.0
    %296 = vmatpush1.msra.mxu0 0.0
    %297 = vmatprep.subr.mxu0 0.0
    %298 = vmatpush1.msra.mxu0 0.0
    %299 = vmatprep.subr.mxu0 0.0
    %300 = vmatpush1.msra.mxu0 0.0
    %301 = vmatprep.subr.mxu0 0.0
    %302 = vmatpush1.msra.mxu0 0.0
    %303 = vmatprep.subr.mxu0 0.0
    %304 = vmatpush1.msra.mxu0 0.0
    %305 = vmatprep.subr.mxu0 0.0
    %306 = vmatpush1.msra.mxu0 0.0
    %307 = vmatprep.subr.mxu0 0.0
    %308 = vmatpush1.msra.mxu0 0.0
    %309 = vmatprep.subr.mxu0 0.0
    %310 = vmatpush1.msra.mxu0 0.0
    %311 = vmatprep.subr.mxu0 0.0
    %312 = vmatpush1.msra.mxu0 0.0
    %313 = vmatprep.subr.mxu0 0.0
    %314 = vmatpush1.msra.mxu0 0.0
    %315 = vmatprep.subr.mxu0 0.0
    %316 = vmatpush1.msra.mxu0 0.0
    %317 = vmatprep.subr.mxu0 0.0
    %318 = vmatpush1.msra.mxu0 0.0
    %319 = vmatprep.subr.mxu0 0.0
    %320 = vmatpush1.msra.mxu0 0.0
    %321 = vmatprep.subr.mxu0 0.0
    %322 = vmatpush1.msra.mxu0 0.0
    %v323 = vand.u32 %v19, 4294901760
    %324 = vmatprep.subr.mxu0 %v323
    %v325 = vand.u32 %v18, 4294901760
    %326 = vmatpush1.msra.mxu0 %v325
    %v327 = vand.u32 %v16, 4294901760
    %328 = vmatprep.subr.mxu0 %v327
    %v329 = vand.u32 %v15, 4294901760
    %330 = vmatpush1.msra.mxu0 %v329
    %331 = vmatprep.subr.mxu0 0.0
    %332 = vmatpush2.msra.mxu0 0.0
    %333 = vmatprep.subr.mxu0 0.0
    %334 = vmatpush2.msra.mxu0 0.0
    %335 = vmatprep.subr.mxu0 0.0
    %336 = vmatpush2.msra.mxu0 0.0
    %337 = vmatprep.subr.mxu0 0.0
    %338 = vmatpush2.msra.mxu0 0.0
    %339 = vmatprep.subr.mxu0 0.0
    %340 = vmatpush2.msra.mxu0 0.0
    %341 = vmatprep.subr.mxu0 0.0
    %342 = vmatpush2.msra.mxu0 0.0
    %343 = vmatprep.subr.mxu0 0.0
    %344 = vmatpush2.msra.mxu0 0.0
    %345 = vmatprep.subr.mxu0 0.0
    %346 = vmatpush2.msra.mxu0 0.0
    %347 = vmatprep.subr.mxu0 0.0
    %348 = vmatpush2.msra.mxu0 0.0
    %349 = vmatprep.subr.mxu0 0.0
    %350 = vmatpush2.msra.mxu0 0.0
    %351 = vmatprep.subr.mxu0 0.0
    %352 = vmatpush2.msra.mxu0 0.0
    %353 = vmatprep.subr.mxu0 0.0
    %354 = vmatpush2.msra.mxu0 0.0
    %355 = vmatprep.subr.mxu0 0.0
    %356 = vmatpush2.msra.mxu0 0.0
    %357 = vmatprep.subr.mxu0 0.0
    %358 = vmatpush2.msra.mxu0 0.0
    %359 = vmatprep.subr.mxu0 0.0
    %360 = vmatpush2.msra.mxu0 0.0
    %361 = vmatprep.subr.mxu0 0.0
    %362 = vmatpush2.msra.mxu0 0.0
    %363 = vmatprep.mubr.f32.mxu0 0.0
    %v364 = vand.u32 %v40, 4294901760
    %v365 = vsub.f32 %v40, %v364
    %v366 = vand.u32 %v365, 4294901760
    %367 = vmatmul.mubr.f32.gmra.mxu0 %v366
    %v368 = vpop.f32.mrf.mxu0
    %v369 = vadd.f32 %v291, %v368
    %v370 = vpop.f32.mrf.mxu0
    %v371 = vadd.f32 %v293, %v370
    %372 = vdwg.mxu0
    %373 = vmatprep.subr.mxu0 0.0
    %374 = vmatpush1.msra.mxu0 0.0
    %375 = vmatprep.subr.mxu0 0.0
    %376 = vmatpush1.msra.mxu0 0.0
    %377 = vmatprep.subr.mxu0 0.0
    %378 = vmatpush1.msra.mxu0 0.0
    %379 = vmatprep.subr.mxu0 0.0
    %380 = vmatpush1.msra.mxu0 0.0
    %381 = vmatprep.subr.mxu0 0.0
    %382 = vmatpush1.msra.mxu0 0.0
    %383 = vmatprep.subr.mxu0 0.0
    %384 = vmatpush1.msra.mxu0 0.0
    %385 = vmatprep.subr.mxu0 0.0
    %386 = vmatpush1.msra.mxu0 0.0
    %387 = vmatprep.subr.mxu0 0.0
    %388 = vmatpush1.msra.mxu0 0.0
    %389 = vmatprep.subr.mxu0 0.0
    %390 = vmatpush1.msra.mxu0 0.0
    %391 = vmatprep.subr.mxu0 0.0
    %392 = vmatpush1.msra.mxu0 0.0
    %393 = vmatprep.subr.mxu0 0.0
    %394 = vmatpush1.msra.mxu0 0.0
    %395 = vmatprep.subr.mxu0 0.0
    %396 = vmatpush1.msra.mxu0 0.0
    %397 = vmatprep.subr.mxu0 0.0
    %398 = vmatpush1.msra.mxu0 0.0
    %399 = vmatprep.subr.mxu0 0.0
    %400 = vmatpush1.msra.mxu0 0.0
    %v401 = vand.u32 %v19, 4294901760
    %v402 = vsub.f32 %v19, %v401
    %v403 = vand.u32 %v402, 4294901760
    %404 = vmatprep.subr.mxu0 %v403
    %v405 = vand.u32 %v18, 4294901760
    %v406 = vsub.f32 %v18, %v405
    %v407 = vand.u32 %v406, 4294901760
    %408 = vmatpush1.msra.mxu0 %v407
    %v409 = vand.u32 %v16, 4294901760
    %v410 = vsub.f32 %v16, %v409
    %v411 = vand.u32 %v410, 4294901760
    %412 = vmatprep.subr.mxu0 %v411
    %v413 = vand.u32 %v15, 4294901760
    %v414 = vsub.f32 %v15, %v413
    %v415 = vand.u32 %v414, 4294901760
    %416 = vmatpush1.msra.mxu0 %v415
    %417 = vmatprep.subr.mxu0 0.0
    %418 = vmatpush2.msra.mxu0 0.0
    %419 = vmatprep.subr.mxu0 0.0
    %420 = vmatpush2.msra.mxu0 0.0
    %421 = vmatprep.subr.mxu0 0.0
    %422 = vmatpush2.msra.mxu0 0.0
    %423 = vmatprep.subr.mxu0 0.0
    %424 = vmatpush2.msra.mxu0 0.0
    %425 = vmatprep.subr.mxu0 0.0
    %426 = vmatpush2.msra.mxu0 0.0
    %427 = vmatprep.subr.mxu0 0.0
    %428 = vmatpush2.msra.mxu0 0.0
    %429 = vmatprep.subr.mxu0 0.0
    %430 = vmatpush2.msra.mxu0 0.0
    %431 = vmatprep.subr.mxu0 0.0
    %432 = vmatpush2.msra.mxu0 0.0
    %433 = vmatprep.subr.mxu0 0.0
    %434 = vmatpush2.msra.mxu0 0.0
    %435 = vmatprep.subr.mxu0 0.0
    %436 = vmatpush2.msra.mxu0 0.0
    %437 = vmatprep.subr.mxu0 0.0
    %438 = vmatpush2.msra.mxu0 0.0
    %439 = vmatprep.subr.mxu0 0.0
    %440 = vmatpush2.msra.mxu0 0.0
    %441 = vmatprep.subr.mxu0 0.0
    %442 = vmatpush2.msra.mxu0 0.0
    %443 = vmatprep.subr.mxu0 0.0
    %444 = vmatpush2.msra.mxu0 0.0
    %445 = vmatprep.subr.mxu0 0.0
    %446 = vmatpush2.msra.mxu0 0.0
    %447 = vmatprep.subr.mxu0 0.0
    %448 = vmatpush2.msra.mxu0 0.0
    %449 = vmatprep.mubr.f32.mxu0 0.0
    %v450 = vand.u32 %v40, 4294901760
    %451 = vmatmul.mubr.f32.gmra.mxu0 %v450
    %v452 = vpop.f32.mrf.mxu0
    %v453 = vadd.f32 %v369, %v452
    %v454 = vpop.f32.mrf.mxu0
    %v455 = vadd.f32 %v371, %v454
    %456 = vdwg.mxu0
    %457 = vmatprep.subr.mxu0 0.0
    %458 = vmatpush1.msra.mxu0 0.0
    %459 = vmatprep.subr.mxu0 0.0
    %460 = vmatpush1.msra.mxu0 0.0
    %461 = vmatprep.subr.mxu0 0.0
    %462 = vmatpush1.msra.mxu0 0.0
    %463 = vmatprep.subr.mxu0 0.0
    %464 = vmatpush1.msra.mxu0 0.0
    %465 = vmatprep.subr.mxu0 0.0
    %466 = vmatpush1.msra.mxu0 0.0
    %467 = vmatprep.subr.mxu0 0.0
    %468 = vmatpush1.msra.mxu0 0.0
    %469 = vmatprep.subr.mxu0 0.0
    %470 = vmatpush1.msra.mxu0 0.0
    %471 = vmatprep.subr.mxu0 0.0
    %472 = vmatpush1.msra.mxu0 0.0
    %473 = vmatprep.subr.mxu0 0.0
    %474 = vmatpush1.msra.mxu0 0.0
    %475 = vmatprep.subr.mxu0 0.0
    %476 = vmatpush1.msra.mxu0 0.0
    %477 = vmatprep.subr.mxu0 0.0
    %478 = vmatpush1.msra.mxu0 0.0
    %479 = vmatprep.subr.mxu0 0.0
    %480 = vmatpush1.msra.mxu0 0.0
    %481 = vmatprep.subr.mxu0 0.0
    %482 = vmatpush1.msra.mxu0 0.0
    %483 = vmatprep.subr.mxu0 0.0
    %484 = vmatpush1.msra.mxu0 0.0
    %v485 = vand.u32 %v19, 4294901760
    %486 = vmatprep.subr.mxu0 %v485
    %v487 = vand.u32 %v18, 4294901760
    %488 = vmatpush1.msra.mxu0 %v487
    %v489 = vand.u32 %v16, 4294901760
    %490 = vmatprep.subr.mxu0 %v489
    %v491 = vand.u32 %v15, 4294901760
    %492 = vmatpush1.msra.mxu0 %v491
    %493 = vmatprep.subr.mxu0 0.0
    %494 = vmatpush2.msra.mxu0 0.0
    %495 = vmatprep.subr.mxu0 0.0
    %496 = vmatpush2.msra.mxu0 0.0
    %497 = vmatprep.subr.mxu0 0.0
    %498 = vmatpush2.msra.mxu0 0.0
    %499 = vmatprep.subr.mxu0 0.0
    %500 = vmatpush2.msra.mxu0 0.0
    %501 = vmatprep.subr.mxu0 0.0
    %502 = vmatpush2.msra.mxu0 0.0
    %503 = vmatprep.subr.mxu0 0.0
    %504 = vmatpush2.msra.mxu0 0.0
    %505 = vmatprep.subr.mxu0 0.0
    %506 = vmatpush2.msra.mxu0 0.0
    %507 = vmatprep.subr.mxu0 0.0
    %508 = vmatpush2.msra.mxu0 0.0
    %509 = vmatprep.subr.mxu0 0.0
    %510 = vmatpush2.msra.mxu0 0.0
    %511 = vmatprep.subr.mxu0 0.0
    %512 = vmatpush2.msra.mxu0 0.0
    %513 = vmatprep.subr.mxu0 0.0
    %514 = vmatpush2.msra.mxu0 0.0
    %515 = vmatprep.subr.mxu0 0.0
    %516 = vmatpush2.msra.mxu0 0.0
    %517 = vmatprep.subr.mxu0 0.0
    %518 = vmatpush2.msra.mxu0 0.0
    %519 = vmatprep.subr.mxu0 0.0
    %520 = vmatpush2.msra.mxu0 0.0
    %521 = vmatprep.subr.mxu0 0.0
    %522 = vmatpush2.msra.mxu0 0.0
    %523 = vmatprep.subr.mxu0 0.0
    %524 = vmatpush2.msra.mxu0 0.0
    %525 = vmatprep.mubr.f32.mxu0 0.0
    %v526 = vand.u32 %v40, 4294901760
    %527 = vmatmul.mubr.f32.gmra.mxu0 %v526
    %v528 = vpop.f32.mrf.mxu0
    %v529 = vadd.f32 %v453, %v528
    %v530 = vpop.f32.mrf.mxu0
    %v531 = vadd.f32 %v455, %v530
    %532 = vdwg.mxu0
    %533 = vmatprep.subr.mxu0 0.0
    %534 = vmatpush1.msra.mxu0 0.0
    %535 = vmatprep.subr.mxu0 0.0
    %536 = vmatpush1.msra.mxu0 0.0
    %537 = vmatprep.subr.mxu0 0.0
    %538 = vmatpush1.msra.mxu0 0.0
    %539 = vmatprep.subr.mxu0 0.0
    %540 = vmatpush1.msra.mxu0 0.0
    %541 = vmatprep.subr.mxu0 0.0
    %542 = vmatpush1.msra.mxu0 0.0
    %543 = vmatprep.subr.mxu0 0.0
    %544 = vmatpush1.msra.mxu0 0.0
    %545 = vmatprep.subr.mxu0 0.0
    %546 = vmatpush1.msra.mxu0 0.0
    %547 = vmatprep.subr.mxu0 0.0
    %548 = vmatpush1.msra.mxu0 0.0
    %549 = vmatprep.subr.mxu0 0.0
    %550 = vmatpush1.msra.mxu0 0.0
    %551 = vmatprep.subr.mxu0 0.0
    %552 = vmatpush1.msra.mxu0 0.0
    %553 = vmatprep.subr.mxu0 0.0
    %554 = vmatpush1.msra.mxu0 0.0
    %555 = vmatprep.subr.mxu0 0.0
    %556 = vmatpush1.msra.mxu0 0.0
    %557 = vmatprep.subr.mxu0 0.0
    %558 = vmatpush1.msra.mxu0 0.0
    %559 = vmatprep.subr.mxu0 0.0
    %560 = vmatpush1.msra.mxu0 0.0
    %561 = vmatprep.subr.mxu0 0.0
    %v562 = vand.u32 %v20, 4294901760
    %563 = vmatpush1.msra.mxu0 %v562
    %564 = vmatprep.subr.mxu0 0.0
    %v565 = vand.u32 %v17, 4294901760
    %566 = vmatpush1.msra.mxu0 %v565
    %567 = vmatprep.subr.mxu0 0.0
    %568 = vmatpush2.msra.mxu0 0.0
    %569 = vmatprep.subr.mxu0 0.0
    %570 = vmatpush2.msra.mxu0 0.0
    %571 = vmatprep.subr.mxu0 0.0
    %572 = vmatpush2.msra.mxu0 0.0
    %573 = vmatprep.subr.mxu0 0.0
    %574 = vmatpush2.msra.mxu0 0.0
    %575 = vmatprep.subr.mxu0 0.0
    %576 = vmatpush2.msra.mxu0 0.0
    %577 = vmatprep.subr.mxu0 0.0
    %578 = vmatpush2.msra.mxu0 0.0
    %579 = vmatprep.subr.mxu0 0.0
    %580 = vmatpush2.msra.mxu0 0.0
    %581 = vmatprep.subr.mxu0 0.0
    %582 = vmatpush2.msra.mxu0 0.0
    %583 = vmatprep.subr.mxu0 0.0
    %584 = vmatpush2.msra.mxu0 0.0
    %585 = vmatprep.subr.mxu0 0.0
    %586 = vmatpush2.msra.mxu0 0.0
    %587 = vmatprep.subr.mxu0 0.0
    %588 = vmatpush2.msra.mxu0 0.0
    %589 = vmatprep.subr.mxu0 0.0
    %590 = vmatpush2.msra.mxu0 0.0
    %591 = vmatprep.subr.mxu0 0.0
    %592 = vmatpush2.msra.mxu0 0.0
    %593 = vmatprep.subr.mxu0 0.0
    %594 = vmatpush2.msra.mxu0 0.0
    %595 = vmatprep.subr.mxu0 0.0
    %596 = vmatpush2.msra.mxu0 0.0
    %597 = vmatprep.subr.mxu0 0.0
    %598 = vmatpush2.msra.mxu0 0.0
    %599 = vmatprep.mubr.f32.mxu0 0.0
    %v600 = vand.u32 %v40, 4294901760
    %v601 = vsub.f32 %v40, %v600
    %v602 = vand.u32 %v601, 4294901760
    %v603 = vsub.f32 %v601, %v602
    %v604 = vand.u32 %v603, 4294901760
    %605 = vmatmul.mubr.f32.gmra.mxu0 %v604
    %v606 = vpop.f32.mrf.mxu0
    %v607 = vadd.f32 %v34, %v606
    %v608 = vpop.f32.mrf.mxu0
    %609 = vdwg.mxu0
    %610 = vmatprep.subr.mxu0 0.0
    %611 = vmatpush1.msra.mxu0 0.0
    %612 = vmatprep.subr.mxu0 0.0
    %613 = vmatpush1.msra.mxu0 0.0
    %614 = vmatprep.subr.mxu0 0.0
    %615 = vmatpush1.msra.mxu0 0.0
    %616 = vmatprep.subr.mxu0 0.0
    %617 = vmatpush1.msra.mxu0 0.0
    %618 = vmatprep.subr.mxu0 0.0
    %619 = vmatpush1.msra.mxu0 0.0
    %620 = vmatprep.subr.mxu0 0.0
    %621 = vmatpush1.msra.mxu0 0.0
    %622 = vmatprep.subr.mxu0 0.0
    %623 = vmatpush1.msra.mxu0 0.0
    %624 = vmatprep.subr.mxu0 0.0
    %625 = vmatpush1.msra.mxu0 0.0
    %626 = vmatprep.subr.mxu0 0.0
    %627 = vmatpush1.msra.mxu0 0.0
    %628 = vmatprep.subr.mxu0 0.0
    %629 = vmatpush1.msra.mxu0 0.0
    %630 = vmatprep.subr.mxu0 0.0
    %631 = vmatpush1.msra.mxu0 0.0
    %632 = vmatprep.subr.mxu0 0.0
    %633 = vmatpush1.msra.mxu0 0.0
    %634 = vmatprep.subr.mxu0 0.0
    %635 = vmatpush1.msra.mxu0 0.0
    %636 = vmatprep.subr.mxu0 0.0
    %637 = vmatpush1.msra.mxu0 0.0
    %638 = vmatprep.subr.mxu0 0.0
    %v639 = vand.u32 %v20, 4294901760
    %v640 = vsub.f32 %v20, %v639
    %v641 = vand.u32 %v640, 4294901760
    %v642 = vsub.f32 %v640, %v641
    %v643 = vand.u32 %v642, 4294901760
    %644 = vmatpush1.msra.mxu0 %v643
    %645 = vmatprep.subr.mxu0 0.0
    %v646 = vand.u32 %v17, 4294901760
    %v647 = vsub.f32 %v17, %v646
    %v648 = vand.u32 %v647, 4294901760
    %v649 = vsub.f32 %v647, %v648
    %v650 = vand.u32 %v649, 4294901760
    %651 = vmatpush1.msra.mxu0 %v650
    %652 = vmatprep.subr.mxu0 0.0
    %653 = vmatpush2.msra.mxu0 0.0
    %654 = vmatprep.subr.mxu0 0.0
    %655 = vmatpush2.msra.mxu0 0.0
    %656 = vmatprep.subr.mxu0 0.0
    %657 = vmatpush2.msra.mxu0 0.0
    %658 = vmatprep.subr.mxu0 0.0
    %659 = vmatpush2.msra.mxu0 0.0
    %660 = vmatprep.subr.mxu0 0.0
    %661 = vmatpush2.msra.mxu0 0.0
    %662 = vmatprep.subr.mxu0 0.0
    %663 = vmatpush2.msra.mxu0 0.0
    %664 = vmatprep.subr.mxu0 0.0
    %665 = vmatpush2.msra.mxu0 0.0
    %666 = vmatprep.subr.mxu0 0.0
    %667 = vmatpush2.msra.mxu0 0.0
    %668 = vmatprep.subr.mxu0 0.0
    %669 = vmatpush2.msra.mxu0 0.0
    %670 = vmatprep.subr.mxu0 0.0
    %671 = vmatpush2.msra.mxu0 0.0
    %672 = vmatprep.subr.mxu0 0.0
    %673 = vmatpush2.msra.mxu0 0.0
    %674 = vmatprep.subr.mxu0 0.0
    %675 = vmatpush2.msra.mxu0 0.0
    %676 = vmatprep.subr.mxu0 0.0
    %677 = vmatpush2.msra.mxu0 0.0
    %678 = vmatprep.subr.mxu0 0.0
    %679 = vmatpush2.msra.mxu0 0.0
    %680 = vmatprep.subr.mxu0 0.0
    %681 = vmatpush2.msra.mxu0 0.0
    %682 = vmatprep.subr.mxu0 0.0
    %683 = vmatpush2.msra.mxu0 0.0
    %684 = vmatprep.mubr.f32.mxu0 0.0
    %v685 = vand.u32 %v40, 4294901760
    %686 = vmatmul.mubr.f32.gmra.mxu0 %v685
    %v687 = vpop.f32.mrf.mxu0
    %v688 = vadd.f32 %v607, %v687
    %v689 = vpop.f32.mrf.mxu0
    %690 = vdwg.mxu0
    %691 = vmatprep.subr.mxu0 0.0
    %692 = vmatpush1.msra.mxu0 0.0
    %693 = vmatprep.subr.mxu0 0.0
    %694 = vmatpush1.msra.mxu0 0.0
    %695 = vmatprep.subr.mxu0 0.0
    %696 = vmatpush1.msra.mxu0 0.0
    %697 = vmatprep.subr.mxu0 0.0
    %698 = vmatpush1.msra.mxu0 0.0
    %699 = vmatprep.subr.mxu0 0.0
    %700 = vmatpush1.msra.mxu0 0.0
    %701 = vmatprep.subr.mxu0 0.0
    %702 = vmatpush1.msra.mxu0 0.0
    %703 = vmatprep.subr.mxu0 0.0
    %704 = vmatpush1.msra.mxu0 0.0
    %705 = vmatprep.subr.mxu0 0.0
    %706 = vmatpush1.msra.mxu0 0.0
    %707 = vmatprep.subr.mxu0 0.0
    %708 = vmatpush1.msra.mxu0 0.0
    %709 = vmatprep.subr.mxu0 0.0
    %710 = vmatpush1.msra.mxu0 0.0
    %711 = vmatprep.subr.mxu0 0.0
    %712 = vmatpush1.msra.mxu0 0.0
    %713 = vmatprep.subr.mxu0 0.0
    %714 = vmatpush1.msra.mxu0 0.0
    %715 = vmatprep.subr.mxu0 0.0
    %716 = vmatpush1.msra.mxu0 0.0
    %717 = vmatprep.subr.mxu0 0.0
    %718 = vmatpush1.msra.mxu0 0.0
    %719 = vmatprep.subr.mxu0 0.0
    %v720 = vand.u32 %v20, 4294901760
    %v721 = vsub.f32 %v20, %v720
    %722 = vmatpush1.msra.mxu0 %v721
    %723 = vmatprep.subr.mxu0 0.0
    %v724 = vand.u32 %v17, 4294901760
    %v725 = vsub.f32 %v17, %v724
    %726 = vmatpush1.msra.mxu0 %v725
    %727 = vmatprep.subr.mxu0 0.0
    %728 = vmatpush2.msra.mxu0 0.0
    %729 = vmatprep.subr.mxu0 0.0
    %730 = vmatpush2.msra.mxu0 0.0
    %731 = vmatprep.subr.mxu0 0.0
    %732 = vmatpush2.msra.mxu0 0.0
    %733 = vmatprep.subr.mxu0 0.0
    %734 = vmatpush2.msra.mxu0 0.0
    %735 = vmatprep.subr.mxu0 0.0
    %736 = vmatpush2.msra.mxu0 0.0
    %737 = vmatprep.subr.mxu0 0.0
    %738 = vmatpush2.msra.mxu0 0.0
    %739 = vmatprep.subr.mxu0 0.0
    %740 = vmatpush2.msra.mxu0 0.0
    %741 = vmatprep.subr.mxu0 0.0
    %742 = vmatpush2.msra.mxu0 0.0
    %743 = vmatprep.subr.mxu0 0.0
    %744 = vmatpush2.msra.mxu0 0.0
    %745 = vmatprep.subr.mxu0 0.0
    %746 = vmatpush2.msra.mxu0 0.0
    %747 = vmatprep.subr.mxu0 0.0
    %748 = vmatpush2.msra.mxu0 0.0
    %749 = vmatprep.subr.mxu0 0.0
    %750 = vmatpush2.msra.mxu0 0.0
    %751 = vmatprep.subr.mxu0 0.0
    %752 = vmatpush2.msra.mxu0 0.0
    %753 = vmatprep.subr.mxu0 0.0
    %754 = vmatpush2.msra.mxu0 0.0
    %755 = vmatprep.subr.mxu0 0.0
    %756 = vmatpush2.msra.mxu0 0.0
    %757 = vmatprep.subr.mxu0 0.0
    %758 = vmatpush2.msra.mxu0 0.0
    %759 = vmatprep.mubr.f32.mxu0 0.0
    %v760 = vand.u32 %v40, 4294901760
    %v761 = vsub.f32 %v40, %v760
    %762 = vmatmul.mubr.f32.gmra.mxu0 %v761
    %v763 = vpop.f32.mrf.mxu0
    %v764 = vadd.f32 %v688, %v763
    %v765 = vpop.f32.mrf.mxu0
    %766 = vdwg.mxu0
    %767 = vmatprep.subr.mxu0 0.0
    %768 = vmatpush1.msra.mxu0 0.0
    %769 = vmatprep.subr.mxu0 0.0
    %770 = vmatpush1.msra.mxu0 0.0
    %771 = vmatprep.subr.mxu0 0.0
    %772 = vmatpush1.msra.mxu0 0.0
    %773 = vmatprep.subr.mxu0 0.0
    %774 = vmatpush1.msra.mxu0 0.0
    %775 = vmatprep.subr.mxu0 0.0
    %776 = vmatpush1.msra.mxu0 0.0
    %777 = vmatprep.subr.mxu0 0.0
    %778 = vmatpush1.msra.mxu0 0.0
    %779 = vmatprep.subr.mxu0 0.0
    %780 = vmatpush1.msra.mxu0 0.0
    %781 = vmatprep.subr.mxu0 0.0
    %782 = vmatpush1.msra.mxu0 0.0
    %783 = vmatprep.subr.mxu0 0.0
    %784 = vmatpush1.msra.mxu0 0.0
    %785 = vmatprep.subr.mxu0 0.0
    %786 = vmatpush1.msra.mxu0 0.0
    %787 = vmatprep.subr.mxu0 0.0
    %788 = vmatpush1.msra.mxu0 0.0
    %789 = vmatprep.subr.mxu0 0.0
    %790 = vmatpush1.msra.mxu0 0.0
    %791 = vmatprep.subr.mxu0 0.0
    %792 = vmatpush1.msra.mxu0 0.0
    %793 = vmatprep.subr.mxu0 0.0
    %794 = vmatpush1.msra.mxu0 0.0
    %795 = vmatprep.subr.mxu0 0.0
    %v796 = vand.u32 %v20, 4294901760
    %797 = vmatpush1.msra.mxu0 %v796
    %798 = vmatprep.subr.mxu0 0.0
    %v799 = vand.u32 %v17, 4294901760
    %800 = vmatpush1.msra.mxu0 %v799
    %801 = vmatprep.subr.mxu0 0.0
    %802 = vmatpush2.msra.mxu0 0.0
    %803 = vmatprep.subr.mxu0 0.0
    %804 = vmatpush2.msra.mxu0 0.0
    %805 = vmatprep.subr.mxu0 0.0
    %806 = vmatpush2.msra.mxu0 0.0
    %807 = vmatprep.subr.mxu0 0.0
    %808 = vmatpush2.msra.mxu0 0.0
    %809 = vmatprep.subr.mxu0 0.0
    %810 = vmatpush2.msra.mxu0 0.0
    %811 = vmatprep.subr.mxu0 0.0
    %812 = vmatpush2.msra.mxu0 0.0
    %813 = vmatprep.subr.mxu0 0.0
    %814 = vmatpush2.msra.mxu0 0.0
    %815 = vmatprep.subr.mxu0 0.0
    %816 = vmatpush2.msra.mxu0 0.0
    %817 = vmatprep.subr.mxu0 0.0
    %818 = vmatpush2.msra.mxu0 0.0
    %819 = vmatprep.subr.mxu0 0.0
    %820 = vmatpush2.msra.mxu0 0.0
    %821 = vmatprep.subr.mxu0 0.0
    %822 = vmatpush2.msra.mxu0 0.0
    %823 = vmatprep.subr.mxu0 0.0
    %824 = vmatpush2.msra.mxu0 0.0
    %825 = vmatprep.subr.mxu0 0.0
    %826 = vmatpush2.msra.mxu0 0.0
    %827 = vmatprep.subr.mxu0 0.0
    %828 = vmatpush2.msra.mxu0 0.0
    %829 = vmatprep.subr.mxu0 0.0
    %830 = vmatpush2.msra.mxu0 0.0
    %831 = vmatprep.subr.mxu0 0.0
    %832 = vmatpush2.msra.mxu0 0.0
    %833 = vmatprep.mubr.f32.mxu0 0.0
    %v834 = vand.u32 %v40, 4294901760
    %v835 = vsub.f32 %v40, %v834
    %v836 = vand.u32 %v835, 4294901760
    %837 = vmatmul.mubr.f32.gmra.mxu0 %v836
    %v838 = vpop.f32.mrf.mxu0
    %v839 = vadd.f32 %v764, %v838
    %v840 = vpop.f32.mrf.mxu0
    %841 = vdwg.mxu0
    %842 = vmatprep.subr.mxu0 0.0
    %843 = vmatpush1.msra.mxu0 0.0
    %844 = vmatprep.subr.mxu0 0.0
    %845 = vmatpush1.msra.mxu0 0.0
    %846 = vmatprep.subr.mxu0 0.0
    %847 = vmatpush1.msra.mxu0 0.0
    %848 = vmatprep.subr.mxu0 0.0
    %849 = vmatpush1.msra.mxu0 0.0
    %850 = vmatprep.subr.mxu0 0.0
    %851 = vmatpush1.msra.mxu0 0.0
    %852 = vmatprep.subr.mxu0 0.0
    %853 = vmatpush1.msra.mxu0 0.0
    %854 = vmatprep.subr.mxu0 0.0
    %855 = vmatpush1.msra.mxu0 0.0
    %856 = vmatprep.subr.mxu0 0.0
    %857 = vmatpush1.msra.mxu0 0.0
    %858 = vmatprep.subr.mxu0 0.0
    %859 = vmatpush1.msra.mxu0 0.0
    %860 = vmatprep.subr.mxu0 0.0
    %861 = vmatpush1.msra.mxu0 0.0
    %862 = vmatprep.subr.mxu0 0.0
    %863 = vmatpush1.msra.mxu0 0.0
    %864 = vmatprep.subr.mxu0 0.0
    %865 = vmatpush1.msra.mxu0 0.0
    %866 = vmatprep.subr.mxu0 0.0
    %867 = vmatpush1.msra.mxu0 0.0
    %868 = vmatprep.subr.mxu0 0.0
    %869 = vmatpush1.msra.mxu0 0.0
    %870 = vmatprep.subr.mxu0 0.0
    %v871 = vand.u32 %v20, 4294901760
    %v872 = vsub.f32 %v20, %v871
    %v873 = vand.u32 %v872, 4294901760
    %874 = vmatpush1.msra.mxu0 %v873
    %875 = vmatprep.subr.mxu0 0.0
    %v876 = vand.u32 %v17, 4294901760
    %v877 = vsub.f32 %v17, %v876
    %v878 = vand.u32 %v877, 4294901760
    %879 = vmatpush1.msra.mxu0 %v878
    %880 = vmatprep.subr.mxu0 0.0
    %881 = vmatpush2.msra.mxu0 0.0
    %882 = vmatprep.subr.mxu0 0.0
    %883 = vmatpush2.msra.mxu0 0.0
    %884 = vmatprep.subr.mxu0 0.0
    %885 = vmatpush2.msra.mxu0 0.0
    %886 = vmatprep.subr.mxu0 0.0
    %887 = vmatpush2.msra.mxu0 0.0
    %888 = vmatprep.subr.mxu0 0.0
    %889 = vmatpush2.msra.mxu0 0.0
    %890 = vmatprep.subr.mxu0 0.0
    %891 = vmatpush2.msra.mxu0 0.0
    %892 = vmatprep.subr.mxu0 0.0
    %893 = vmatpush2.msra.mxu0 0.0
    %894 = vmatprep.subr.mxu0 0.0
    %895 = vmatpush2.msra.mxu0 0.0
    %896 = vmatprep.subr.mxu0 0.0
    %897 = vmatpush2.msra.mxu0 0.0
    %898 = vmatprep.subr.mxu0 0.0
    %899 = vmatpush2.msra.mxu0 0.0
    %900 = vmatprep.subr.mxu0 0.0
    %901 = vmatpush2.msra.mxu0 0.0
    %902 = vmatprep.subr.mxu0 0.0
    %903 = vmatpush2.msra.mxu0 0.0
    %904 = vmatprep.subr.mxu0 0.0
    %905 = vmatpush2.msra.mxu0 0.0
    %906 = vmatprep.subr.mxu0 0.0
    %907 = vmatpush2.msra.mxu0 0.0
    %908 = vmatprep.subr.mxu0 0.0
    %909 = vmatpush2.msra.mxu0 0.0
    %910 = vmatprep.subr.mxu0 0.0
    %911 = vmatpush2.msra.mxu0 0.0
    %912 = vmatprep.mubr.f32.mxu0 0.0
    %v913 = vand.u32 %v40, 4294901760
    %914 = vmatmul.mubr.f32.gmra.mxu0 %v913
    %v915 = vpop.f32.mrf.mxu0
    %v916 = vadd.f32 %v839, %v915
    %v917 = vpop.f32.mrf.mxu0
    %918 = vdwg.mxu0
    %919 = vmatprep.subr.mxu0 0.0
    %920 = vmatpush1.msra.mxu0 0.0
    %921 = vmatprep.subr.mxu0 0.0
    %922 = vmatpush1.msra.mxu0 0.0
    %923 = vmatprep.subr.mxu0 0.0
    %924 = vmatpush1.msra.mxu0 0.0
    %925 = vmatprep.subr.mxu0 0.0
    %926 = vmatpush1.msra.mxu0 0.0
    %927 = vmatprep.subr.mxu0 0.0
    %928 = vmatpush1.msra.mxu0 0.0
    %929 = vmatprep.subr.mxu0 0.0
    %930 = vmatpush1.msra.mxu0 0.0
    %931 = vmatprep.subr.mxu0 0.0
    %932 = vmatpush1.msra.mxu0 0.0
    %933 = vmatprep.subr.mxu0 0.0
    %934 = vmatpush1.msra.mxu0 0.0
    %935 = vmatprep.subr.mxu0 0.0
    %936 = vmatpush1.msra.mxu0 0.0
    %937 = vmatprep.subr.mxu0 0.0
    %938 = vmatpush1.msra.mxu0 0.0
    %939 = vmatprep.subr.mxu0 0.0
    %940 = vmatpush1.msra.mxu0 0.0
    %941 = vmatprep.subr.mxu0 0.0
    %942 = vmatpush1.msra.mxu0 0.0
    %943 = vmatprep.subr.mxu0 0.0
    %944 = vmatpush1.msra.mxu0 0.0
    %945 = vmatprep.subr.mxu0 0.0
    %946 = vmatpush1.msra.mxu0 0.0
    %947 = vmatprep.subr.mxu0 0.0
    %v948 = vand.u32 %v20, 4294901760
    %949 = vmatpush1.msra.mxu0 %v948
    %950 = vmatprep.subr.mxu0 0.0
    %v951 = vand.u32 %v17, 4294901760
    %952 = vmatpush1.msra.mxu0 %v951
    %953 = vmatprep.subr.mxu0 0.0
    %954 = vmatpush2.msra.mxu0 0.0
    %955 = vmatprep.subr.mxu0 0.0
    %956 = vmatpush2.msra.mxu0 0.0
    %957 = vmatprep.subr.mxu0 0.0
    %958 = vmatpush2.msra.mxu0 0.0
    %959 = vmatprep.subr.mxu0 0.0
    %960 = vmatpush2.msra.mxu0 0.0
    %961 = vmatprep.subr.mxu0 0.0
    %962 = vmatpush2.msra.mxu0 0.0
    %963 = vmatprep.subr.mxu0 0.0
    %964 = vmatpush2.msra.mxu0 0.0
    %965 = vmatprep.subr.mxu0 0.0
    %966 = vmatpush2.msra.mxu0 0.0
    %967 = vmatprep.subr.mxu0 0.0
    %968 = vmatpush2.msra.mxu0 0.0
    %969 = vmatprep.subr.mxu0 0.0
    %970 = vmatpush2.msra.mxu0 0.0
    %971 = vmatprep.subr.mxu0 0.0
    %972 = vmatpush2.msra.mxu0 0.0
    %973 = vmatprep.subr.mxu0 0.0
    %974 = vmatpush2.msra.mxu0 0.0
    %975 = vmatprep.subr.mxu0 0.0
    %976 = vmatpush2.msra.mxu0 0.0
    %977 = vmatprep.subr.mxu0 0.0
    %978 = vmatpush2.msra.mxu0 0.0
    %979 = vmatprep.subr.mxu0 0.0
    %980 = vmatpush2.msra.mxu0 0.0
    %981 = vmatprep.subr.mxu0 0.0
    %982 = vmatpush2.msra.mxu0 0.0
    %983 = vmatprep.subr.mxu0 0.0
    %984 = vmatpush2.msra.mxu0 0.0
    %985 = vmatprep.mubr.f32.mxu0 0.0
    %v986 = vand.u32 %v40, 4294901760
    %987 = vmatmul.mubr.f32.gmra.mxu0 %v986
    %v988 = vpop.f32.mrf.mxu0
    %v989 = vadd.f32 %v916, %v988
    %v990 = vpop.f32.mrf.mxu0
    %991 = vdwg.mxu0
    %v992 = vand.u32 2147483647, %v529
    %vm993 = vcmp.le.f32.partialorder %v992, 0.7853982
    %vm994 = vcmp.lt.s32.totalorder %v529, 0
    %v995 = vand.u32 %v529, 2139095040
    %v996 = vshrl.u32 %v995, 23
    %v997 = vsub.s32 %v996, 127
    %v998 = vand.u32 2147483647, %v529
    %v999 = vand.u32 %v998, 8388607
    %v1000 = vor.u32 %v999, 8388608
    %v1001 = vsub.s32 0, %v1000
    %v1002 = vadd.s32 %v997, 1
    %vm1003 = vcmp.gt.s32.totalorder %v1002, 0
    %v1004 = vsel %vm1003, %v1002, 0
    %v1005 = vshrl.u32 %v1004, 5
    %v1006 = vand.u32 %v1004, 31
    %v1007 = vsub.s32 32, %v1006
    %v1008 = vshrl.u32 683565275, %v1007
    %v1009 = vshll.u32 683565275, %v1006
    %v1010 = vshrl.u32 2475754826, %v1007
    %v1011 = vor.u32 %v1009, %v1010
    %v1012 = vshll.u32 2475754826, %v1006
    %v1013 = vshrl.u32 2131351028, %v1007
    %v1014 = vor.u32 %v1012, %v1013
    %v1015 = vshll.u32 2131351028, %v1006
    %v1016 = vshrl.u32 2102212464, %v1007
    %v1017 = vor.u32 %v1015, %v1016
    %v1018 = vshll.u32 2102212464, %v1006
    %v1019 = vshrl.u32 920167782, %v1007
    %v1020 = vor.u32 %v1018, %v1019
    %v1021 = vshll.u32 920167782, %v1006
    %v1022 = vshrl.u32 1326507024, %v1007
    %v1023 = vor.u32 %v1021, %v1022
    %vm1024 = vcmp.lt.s32.totalorder %v1005, 1
    %vm1025 = vcmp.lt.s32.totalorder %v1005, 2
    %vm1026 = vcmp.lt.s32.totalorder %v1005, 3
    %vm1027 = vcmp.lt.s32.totalorder %v1005, 4
    %v1028 = vsel %vm1024, %v1008, %v1011
    %v1029 = vsel %vm1027, %v1017, 2102212464
    %v1030 = vsel %vm1026, %v1014, %v1029
    %v1031 = vsel %vm1025, %v1028, %v1030
    %v1032 = vsel %vm1024, %v1011, %v1014
    %v1033 = vsel %vm1027, %v1020, 920167782
    %v1034 = vsel %vm1026, %v1017, %v1033
    %v1035 = vsel %vm1025, %v1032, %v1034
    %v1036 = vsel %vm1024, %v1014, %v1017
    %v1037 = vsel %vm1027, %v1023, 1326507024
    %v1038 = vsel %vm1026, %v1020, %v1037
    %v1039 = vsel %vm1025, %v1036, %v1038
    %v1040 = vshll.u32 %v1000, 8
    %v1041 = vmul.u32.u64.compose %v1040, %v1039
    %v1042 = vextract.low.u32 %v1041
    %v1043 = vextract.high.u32 %v1041
    %v1044 = vmul.u32.u64.compose %v1040, %v1035
    %v1045 = vextract.low.u32 %v1044
    %v1046 = vextract.high.u32 %v1044
    %v1047 = vmul.u32 %v1040, %v1031
    %v1048 = vadd.s32 %v1043, %v1045
    %vm1049 = vc.u32 %v1043, %v1045
    %v1050 = vadd.s32 %v1046, 1
    %v1051 = vsel %vm1049, %v1050, %v1046
    %v1052 = vadd.s32 %v1047, %v1051
    %v1053 = vadd.s32 %v1052, 536870912
    %v1054 = vshrl.u32 %v1053, 30
    %v1055 = vshll.u32 %v1054, 30
    %v1056 = vsub.s32 %v1052, %v1055
    %vm1057 = vcmp.lt.s32.totalorder %v1056, 0
    %v1058 = vsub.s32 0, %v1056
    %v1059 = vsel %vm1057, %v1058, %v1056
    %v1060 = vclz %v1059
    %v1061 = vsub.s32 %v1060, 2
    %vm1062 = vcmp.gt.s32.totalorder 0, %v1061
    %v1063 = vsel %vm1062, 0, %v1061
    %v1064 = vsub.s32 32, %v1063
    %v1065 = vshll.u32 %v1056, %v1063
    %v1066 = vshrl.u32 %v1048, %v1064
    %v1067 = vor.u32 %v1065, %v1066
    %v1068 = vsub.s32 4294967266, %v1063
    %v1069 = vadd.s32 %v1068, 127
    %v1070 = vshll.u32 %v1069, 23
    %v1071 = vor.u32 4788187, %v1070
    %v1072 = vand.u32 2147483647, %v1071
    %v1074 = vcvt.s32.f32 %v1067
    %v1075 = vmul.f32 %v1074, %v1072
    %v1076 = vxor.u32 %v1075, 2147483648
    %v1077 = vsel %vm994, %v1076, %v1075
    %v1078 = vsub.s32 4, %v1054
    %v1079 = vsel %vm994, %v1078, %v1054
    %v1080 = vsel %vm993, %v529, %v1077
    %v1081 = vsel %vm993, 0, %v1079
    %v1082 = vcosq.f32.pop %v1080
    %v1083 = vsinq.f32.pop %v1080
    %vm1084 = vweird.f32 %v529
    %v1085 = vand.u32 %v1081, 3
    %vm1086 = vcmp.lt.s32.totalorder %v1085, 2
    %vm1087 = vcmp.eq.s32.totalorder %v1085, 0
    %v1088 = vxor.u32 %v1083, 2147483648
    %v1089 = vsel %vm1087, %v1082, %v1088
    %vm1090 = vcmp.eq.s32.totalorder %v1085, 2
    %v1091 = vxor.u32 %v1082, 2147483648
    %v1092 = vsel %vm1090, %v1091, %v1083
    %v1093 = vsel %vm1086, %v1089, %v1092
    %v1094 = vsel %vm1084, nan, %v1093
    %v1095 = vand.u32 2147483647, %v531
    %vm1096 = vcmp.le.f32.partialorder %v1095, 0.7853982
    %vm1097 = vcmp.lt.s32.totalorder %v531, 0
    %v1098 = vand.u32 %v531, 2139095040
    %v1099 = vshrl.u32 %v1098, 23
    %v1100 = vsub.s32 %v1099, 127
    %v1101 = vand.u32 2147483647, %v531
    %v1102 = vand.u32 %v1101, 8388607
    %v1103 = vor.u32 %v1102, 8388608
    %v1104 = vsub.s32 0, %v1103
    %v1105 = vadd.s32 %v1100, 1
    %vm1106 = vcmp.gt.s32.totalorder %v1105, 0
    %v1107 = vsel %vm1106, %v1105, 0
    %v1108 = vshrl.u32 %v1107, 5
    %v1109 = vand.u32 %v1107, 31
    %v1110 = vsub.s32 32, %v1109
    %v1111 = vshrl.u32 683565275, %v1110
    %v1112 = vshll.u32 683565275, %v1109
    %v1113 = vshrl.u32 2475754826, %v1110
    %v1114 = vor.u32 %v1112, %v1113
    %v1115 = vshll.u32 2475754826, %v1109
    %v1116 = vshrl.u32 2131351028, %v1110
    %v1117 = vor.u32 %v1115, %v1116
    %v1118 = vshll.u32 2131351028, %v1109
    %v1119 = vshrl.u32 2102212464, %v1110
    %v1120 = vor.u32 %v1118, %v1119
    %v1121 = vshll.u32 2102212464, %v1109
    %v1122 = vshrl.u32 920167782, %v1110
    %v1123 = vor.u32 %v1121, %v1122
    %v1124 = vshll.u32 920167782, %v1109
    %v1125 = vshrl.u32 1326507024, %v1110
    %v1126 = vor.u32 %v1124, %v1125
    %vm1127 = vcmp.lt.s32.totalorder %v1108, 1
    %vm1128 = vcmp.lt.s32.totalorder %v1108, 2
    %vm1129 = vcmp.lt.s32.totalorder %v1108, 3
    %vm1130 = vcmp.lt.s32.totalorder %v1108, 4
    %v1131 = vsel %vm1127, %v1111, %v1114
    %v1132 = vsel %vm1130, %v1120, 2102212464
    %v1133 = vsel %vm1129, %v1117, %v1132
    %v1134 = vsel %vm1128, %v1131, %v1133
    %v1135 = vsel %vm1127, %v1114, %v1117
    %v1136 = vsel %vm1130, %v1123, 920167782
    %v1137 = vsel %vm1129, %v1120, %v1136
    %v1138 = vsel %vm1128, %v1135, %v1137
    %v1139 = vsel %vm1127, %v1117, %v1120
    %v1140 = vsel %vm1130, %v1126, 1326507024
    %v1141 = vsel %vm1129, %v1123, %v1140
    %v1142 = vsel %vm1128, %v1139, %v1141
    %v1143 = vshll.u32 %v1103, 8
    %v1144 = vmul.u32.u64.compose %v1143, %v1142
    %v1145 = vextract.low.u32 %v1144
    %v1146 = vextract.high.u32 %v1144
    %v1147 = vmul.u32.u64.compose %v1143, %v1138
    %v1148 = vextract.low.u32 %v1147
    %v1149 = vextract.high.u32 %v1147
    %v1150 = vmul.u32 %v1143, %v1134
    %v1151 = vadd.s32 %v1146, %v1148
    %vm1152 = vc.u32 %v1146, %v1148
    %v1153 = vadd.s32 %v1149, 1
    %v1154 = vsel %vm1152, %v1153, %v1149
    %v1155 = vadd.s32 %v1150, %v1154
    %v1156 = vadd.s32 %v1155, 536870912
    %v1157 = vshrl.u32 %v1156, 30
    %v1158 = vshll.u32 %v1157, 30
    %v1159 = vsub.s32 %v1155, %v1158
    %vm1160 = vcmp.lt.s32.totalorder %v1159, 0
    %v1161 = vsub.s32 0, %v1159
    %v1162 = vsel %vm1160, %v1161, %v1159
    %v1163 = vclz %v1162
    %v1164 = vsub.s32 %v1163, 2
    %vm1165 = vcmp.gt.s32.totalorder 0, %v1164
    %v1166 = vsel %vm1165, 0, %v1164
    %v1167 = vsub.s32 32, %v1166
    %v1168 = vshll.u32 %v1159, %v1166
    %v1169 = vshrl.u32 %v1151, %v1167
    %v1170 = vor.u32 %v1168, %v1169
    %v1171 = vsub.s32 4294967266, %v1166
    %v1172 = vadd.s32 %v1171, 127
    %v1173 = vshll.u32 %v1172, 23
    %v1174 = vor.u32 4788187, %v1173
    %v1175 = vand.u32 2147483647, %v1174
    %v1177 = vcvt.s32.f32 %v1170
    %v1178 = vmul.f32 %v1177, %v1175
    %v1179 = vxor.u32 %v1178, 2147483648
    %v1180 = vsel %vm1097, %v1179, %v1178
    %v1181 = vsub.s32 4, %v1157
    %v1182 = vsel %vm1097, %v1181, %v1157
    %v1183 = vsel %vm1096, %v531, %v1180
    %v1184 = vsel %vm1096, 0, %v1182
    %v1185 = vcosq.f32.pop %v1183
    %v1186 = vsinq.f32.pop %v1183
    %vm1187 = vweird.f32 %v531
    %v1188 = vand.u32 %v1184, 3
    %vm1189 = vcmp.lt.s32.totalorder %v1188, 2
    %vm1190 = vcmp.eq.s32.totalorder %v1188, 0
    %v1191 = vxor.u32 %v1186, 2147483648
    %v1192 = vsel %vm1190, %v1185, %v1191
    %vm1193 = vcmp.eq.s32.totalorder %v1188, 2
    %v1194 = vxor.u32 %v1185, 2147483648
    %v1195 = vsel %vm1193, %v1194, %v1186
    %v1196 = vsel %vm1189, %v1192, %v1195
    %v1197 = vsel %vm1187, nan, %v1196
    %v1198 = vand.u32 2147483647, %v989
    %vm1199 = vcmp.le.f32.partialorder %v1198, 0.7853982
    %vm1200 = vcmp.lt.s32.totalorder %v989, 0
    %v1201 = vand.u32 %v989, 2139095040
    %v1202 = vshrl.u32 %v1201, 23
    %v1203 = vsub.s32 %v1202, 127
    %v1204 = vand.u32 2147483647, %v989
    %v1205 = vand.u32 %v1204, 8388607
    %v1206 = vor.u32 %v1205, 8388608
    %v1207 = vsub.s32 0, %v1206
    %v1208 = vadd.s32 %v1203, 1
    %vm1209 = vcmp.gt.s32.totalorder %v1208, 0
    %v1210 = vsel %vm1209, %v1208, 0
    %v1211 = vshrl.u32 %v1210, 5
    %v1212 = vand.u32 %v1210, 31
    %v1213 = vsub.s32 32, %v1212
    %v1214 = vshrl.u32 683565275, %v1213
    %v1215 = vshll.u32 683565275, %v1212
    %v1216 = vshrl.u32 2475754826, %v1213
    %v1217 = vor.u32 %v1215, %v1216
    %v1218 = vshll.u32 2475754826, %v1212
    %v1219 = vshrl.u32 2131351028, %v1213
    %v1220 = vor.u32 %v1218, %v1219
    %v1221 = vshll.u32 2131351028, %v1212
    %v1222 = vshrl.u32 2102212464, %v1213
    %v1223 = vor.u32 %v1221, %v1222
    %v1224 = vshll.u32 2102212464, %v1212
    %v1225 = vshrl.u32 920167782, %v1213
    %v1226 = vor.u32 %v1224, %v1225
    %v1227 = vshll.u32 920167782, %v1212
    %v1228 = vshrl.u32 1326507024, %v1213
    %v1229 = vor.u32 %v1227, %v1228
    %vm1230 = vcmp.lt.s32.totalorder %v1211, 1
    %vm1231 = vcmp.lt.s32.totalorder %v1211, 2
    %vm1232 = vcmp.lt.s32.totalorder %v1211, 3
    %vm1233 = vcmp.lt.s32.totalorder %v1211, 4
    %v1234 = vsel %vm1230, %v1214, %v1217
    %v1235 = vsel %vm1233, %v1223, 2102212464
    %v1236 = vsel %vm1232, %v1220, %v1235
    %v1237 = vsel %vm1231, %v1234, %v1236
    %v1238 = vsel %vm1230, %v1217, %v1220
    %v1239 = vsel %vm1233, %v1226, 920167782
    %v1240 = vsel %vm1232, %v1223, %v1239
    %v1241 = vsel %vm1231, %v1238, %v1240
    %v1242 = vsel %vm1230, %v1220, %v1223
    %v1243 = vsel %vm1233, %v1229, 1326507024
    %v1244 = vsel %vm1232, %v1226, %v1243
    %v1245 = vsel %vm1231, %v1242, %v1244
    %v1246 = vshll.u32 %v1206, 8
    %v1247 = vmul.u32.u64.compose %v1246, %v1245
    %v1248 = vextract.low.u32 %v1247
    %v1249 = vextract.high.u32 %v1247
    %v1250 = vmul.u32.u64.compose %v1246, %v1241
    %v1251 = vextract.low.u32 %v1250
    %v1252 = vextract.high.u32 %v1250
    %v1253 = vmul.u32 %v1246, %v1237
    %v1254 = vadd.s32 %v1249, %v1251
    %vm1255 = vc.u32 %v1249, %v1251
    %v1256 = vadd.s32 %v1252, 1
    %v1257 = vsel %vm1255, %v1256, %v1252
    %v1258 = vadd.s32 %v1253, %v1257
    %v1259 = vadd.s32 %v1258, 536870912
    %v1260 = vshrl.u32 %v1259, 30
    %v1261 = vshll.u32 %v1260, 30
    %v1262 = vsub.s32 %v1258, %v1261
    %vm1263 = vcmp.lt.s32.totalorder %v1262, 0
    %v1264 = vsub.s32 0, %v1262
    %v1265 = vsel %vm1263, %v1264, %v1262
    %v1266 = vclz %v1265
    %v1267 = vsub.s32 %v1266, 2
    %vm1268 = vcmp.gt.s32.totalorder 0, %v1267
    %v1269 = vsel %vm1268, 0, %v1267
    %v1270 = vsub.s32 32, %v1269
    %v1271 = vshll.u32 %v1262, %v1269
    %v1272 = vshrl.u32 %v1254, %v1270
    %v1273 = vor.u32 %v1271, %v1272
    %v1274 = vsub.s32 4294967266, %v1269
    %v1275 = vadd.s32 %v1274, 127
    %v1276 = vshll.u32 %v1275, 23
    %v1277 = vor.u32 4788187, %v1276
    %v1278 = vand.u32 2147483647, %v1277
    %v1280 = vcvt.s32.f32 %v1273
    %v1281 = vmul.f32 %v1280, %v1278
    %v1282 = vxor.u32 %v1281, 2147483648
    %v1283 = vsel %vm1200, %v1282, %v1281
    %v1284 = vsub.s32 4, %v1260
    %v1285 = vsel %vm1200, %v1284, %v1260
    %v1286 = vsel %vm1199, %v989, %v1283
    %v1287 = vsel %vm1199, 0, %v1285
    %v1288 = vcosq.f32.pop %v1286
    %v1289 = vsinq.f32.pop %v1286
    %vm1290 = vweird.f32 %v989
    %v1291 = vand.u32 %v1287, 3
    %vm1292 = vcmp.lt.s32.totalorder %v1291, 2
    %vm1293 = vcmp.eq.s32.totalorder %v1291, 0
    %v1294 = vxor.u32 %v1289, 2147483648
    %v1295 = vsel %vm1293, %v1288, %v1294
    %vm1296 = vcmp.eq.s32.totalorder %v1291, 2
    %v1297 = vxor.u32 %v1288, 2147483648
    %v1298 = vsel %vm1296, %v1297, %v1289
    %v1299 = vsel %vm1292, %v1295, %v1298
    %v1300 = vsel %vm1290, nan, %v1299
    %v1304 = vcombine.low %v1094, %v1197
    %v1305 = vcombine.high %v1094, %v1197
    %v1306 = vcombine.high %v1300, %v1300
    %1310 = vst [vmem:[#allocation2] sm:$0xff] %v1304
    %1311 = vst [vmem:[#allocation2 + $0x8] sm:$0xf] %v1300
    %1312 = vst [vmem:[#allocation2 + $0xc] sm:$0xff] %v1305
    %1313 = vst [vmem:[#allocation2 + $0x14] sm:$0xf] %v1306
    // Predicated region
    $region14: #{_lambda_.1} parent=1 // pred_check
      _
    $region15: #{_lambda_.1} parent=1 // pred_check_branch
      %1315 = sbr.rel (0) target = $region17
    $region16: #{_lambda_.1} parent=1 // pred_region
      // Predicated region
      $region18: #{_lambda_.1} parent=16 // pred_check
        _
      $region19: #{_lambda_.1} parent=16 // pred_check_branch
        %1317 = sbr.rel (0) target = $region21
      $region20: #{_lambda_.1} parent=16 // pred_region
        // Predicated region
        $region22: #{_lambda_.1} parent=20 // pred_check
          _
        $region23: #{_lambda_.1} parent=20 // pred_check_branch
          %1319 = sbr.rel (0) target = $region25
        $region24: #{_lambda_.1} parent=20 // pred_region
          %s1320 = scalar_lea.vmem [#allocation2], 8
          %s1321 = scalar_lea.vmem %s3, 8
          loop: start=0, step=1, limit=1
          $region26: #{_lambda_.1} parent=24 // loop_pre_header
            _
          $region27: #{_lambda_.1} parent=24 // loop_header
            %s1323 = sphi 0, %s1327
            %p1324 = scmp.ge.s32.totalorder %s1323, 1
            %s1328 = sphi [#allocation2], [#allocation2]
            %s1329 = sphi %s3, %s3
          $region28: #{_lambda_.1} parent=24 // loop_header_branch
            %1326 = sbr.rel (%p1324) target = $region32
          $region29: #{_lambda_.1} parent=24 // loop_body
            %v1330 = vld [vmem:[%s1328] sm:$0xff]
            %1331 = vst [vmem:[%s1329] sm:$0xff] %v1330
          $region30: #{_lambda_.1} parent=24 // loop_footer
            %s1327 = sadd.s32 1, %s1323
          $region31: #{_lambda_.1} parent=24 // loop_footer_branch
            %1322 = sbr.rel target = $region27
          $region32: #{_lambda_.1} parent=24 // loop_exit
            _
          %s1333 = ssub.s32 16, 1
          loop: start=0, step=1, limit=1
          $region33: #{_lambda_.1} parent=24 // loop_pre_header
            _
          $region34: #{_lambda_.1} parent=24 // loop_header
            %s1335 = sphi 0, %s1339
            %p1336 = scmp.ge.s32.totalorder %s1335, 1
            %s1340 = sphi %s1320, %s1320
            %s1341 = sphi %s1321, %s1321
          $region35: #{_lambda_.1} parent=24 // loop_header_branch
            %1338 = sbr.rel (%p1336) target = $region39
          $region36: #{_lambda_.1} parent=24 // loop_body
            %v1342 = vld [vmem:[%s1340] sm:%s1333]
            %1343 = vst [vmem:[%s1341] sm:%s1333] %v1342
          $region37: #{_lambda_.1} parent=24 // loop_footer
            %s1339 = sadd.s32 1, %s1335
          $region38: #{_lambda_.1} parent=24 // loop_footer_branch
            %1334 = sbr.rel target = $region34
          $region39: #{_lambda_.1} parent=24 // loop_exit
            _
        $region25: #{_lambda_.1} parent=20 // pred_fallthru
          _
      $region21: #{_lambda_.1} parent=16 // pred_fallthru
        _
      %1344 = vnop
    $region17: #{_lambda_.1} parent=1 // pred_fallthru
      _
    // Predicated region
    $region40: #{_lambda_.1} parent=1 // pred_check
      _
    $region41: #{_lambda_.1} parent=1 // pred_check_branch
      %1346 = sbr.rel (0) target = $region43
    $region42: #{_lambda_.1} parent=1 // pred_region
      _
    $region43: #{_lambda_.1} parent=1 // pred_fallthru
      _

</llo_original>
